<compile_context>
chip_gen: v7x
topology: tpu7x:2x2x1
jax: 0.10.0
libtpu: 0.0.40
codegen_flags: <defaults>
</compile_context>

<pallas_src>
import math

import jax
import jax.numpy as jnp
from jax.experimental import pallas as pl
from jax.experimental.pallas import tpu as pltpu

_MIB = 1024 * 1024
# Conservative working-set budget: fits v7x's 64 MiB physical VMEM (with
# headroom for compiler-internal scratch) and is trivially fine on v5e/v6e.
_VMEM_TILE_BUDGET = 44 * _MIB
_VMEM_LIMIT_CAP = 56 * _MIB


def _round_up(x, m):
    return ((x + m - 1) // m) * m


# ----------------------------------------------------------------------------
# Kernels
# ----------------------------------------------------------------------------
def _linear_kernel_fullk(x_ref, w_ref, b_ref, o_ref):
    # x_ref: (tm, K), w_ref: (K, tn), b_ref: (1, tn), o_ref: (tm, tn)
    acc = jnp.dot(x_ref[...], w_ref[...], preferred_element_type=jnp.float32)
    o_ref[...] = (acc + b_ref[...].astype(jnp.float32)).astype(o_ref.dtype)


def _linear_kernel_ktiled(x_ref, w_ref, b_ref, o_ref, acc_ref):
    # x_ref: (tm, tk), w_ref: (tk, tn), acc_ref: (tm, tn) f32 resident over K.
    k = pl.program_id(2)
    part = jnp.dot(x_ref[...], w_ref[...], preferred_element_type=jnp.float32)

    @pl.when(k == 0)
    def _():
        acc_ref[...] = part          # write-on-first-step: no zero-fill pass

    @pl.when(k > 0)
    def _():
        acc_ref[...] += part

    @pl.when(k == pl.num_programs(2) - 1)
    def _():
        o_ref[...] = (acc_ref[...] + b_ref[...].astype(jnp.float32)).astype(o_ref.dtype)


# ----------------------------------------------------------------------------
# Tile selection helpers
# ----------------------------------------------------------------------------
def _pick_tk(K, cap):
    """Largest lane-aligned K tile <= cap that exactly tiles K, else full K."""
    if K <= cap or K % 128 != 0:
        return K
    t = cap - (cap % 128)
    while t >= 128:
        if K % t == 0:
            return t
        t -= 128
    return K


def _vmem_bytes(tm, tn, tk, in_sz, out_sz, k_tiled):
    # Double-buffered input/output tiles (+ f32 accumulator when K is tiled).
    b = 2 * tm * tk * in_sz + 2 * tk * tn * in_sz + 2 * tm * tn * out_sz + 2 * tn * 4
    if k_tiled:
        b += tm * tn * 4
    return b


# ----------------------------------------------------------------------------
# Public entry point
# ----------------------------------------------------------------------------
def final_linear(x, weight_kn, bias, *, tm=1024, tn=1024, tk=None,
                 compute_dtype=jnp.bfloat16, out_dtype=None):
    """Forward of FinalLinear (== nn.Linear(d_model, vocab_size)): x @ W + b.

    x:         (..., d_model)
    weight_kn: (d_model, vocab_size) -- the PyTorch (vocab, d_model) parameter
               transposed ONCE at init (see init_final_linear_params /
               weight_from_torch_layout); never transposed per call.
    bias:      (vocab_size,)
    Returns (..., vocab_size) in x's dtype (or out_dtype if given).
    """
    *lead, K = x.shape
    K_w, N = weight_kn.shape
    assert K == K_w, "weight must be (d_model, vocab_size)"
    M = int(math.prod(lead)) if lead else 1

    if out_dtype is None:
        out_dtype = x.dtype
    if compute_dtype is not None:
        x = x.astype(compute_dtype)
        weight_kn = weight_kn.astype(compute_dtype)
    bias2 = bias.reshape(1, N).astype(jnp.float32)

    in_sz = jnp.dtype(x.dtype).itemsize
    out_sz = jnp.dtype(out_dtype).itemsize
    # Sublane alignment for the M axis: 8 (32-bit), 16 (bf16/f16), 32 (8-bit).
    m_align = 8 * max(1, 4 // in_sz)

    # Cap tiles for small problems (ragged boundary blocks handle the rest —
    # no wrapper-side padding of x / weight / output).
    tm = min(tm, _round_up(M, m_align))
    tn = min(tn, _round_up(N, 128))

    # K tiling: prefer one full-K pass (no accumulator RMW, fewer grid steps)
    # whenever the full-K working set fits the cross-generation VMEM budget.
    if tk is None:
        if _vmem_bytes(tm, tn, K, in_sz, out_sz, k_tiled=False) <= _VMEM_TILE_BUDGET:
            tk = K
        else:
            tk = _pick_tk(K, 2048 if in_sz <= 2 else 1024)
    else:
        assert tk == K or (K % tk == 0 and tk % 128 == 0), \
            "tk must tile d_model exactly and be lane (128) aligned"
    k_tiled = tk != K

    # v7x has 2 TensorCores: keep >=2 points on the parallel grid when possible.
    if pl.cdiv(M, tm) * pl.cdiv(N, tn) < 2:
        if N > 2 * 128:
            tn = _round_up(pl.cdiv(N, 2), 128)
        elif M > 2 * m_align:
            tm = _round_up(pl.cdiv(M, 2), m_align)

    # Safety net: shrink tiles until the working set fits the VMEM budget.
    while _vmem_bytes(tm, tn, tk, in_sz, out_sz, k_tiled) > _VMEM_TILE_BUDGET:
        if tn > 256:
            tn = _round_up(tn // 2, 128)
        elif tm > m_align:
            tm = max(m_align, _round_up(tm // 2, m_align))
        else:
            break  # pathological; let the compiler decide

    x2 = x.reshape(M, K)
    grid_m, grid_n = pl.cdiv(M, tm), pl.cdiv(N, tn)
    grid_k = pl.cdiv(K, tk)

    # Advisory cost hint: x is re-streamed once per N tile, weight once per
    # M tile, plus one output writeback.
    cost = pl.CostEstimate(
        flops=2 * M * N * K,
        transcendentals=0,
        bytes_accessed=(M * K * grid_n + K * N * grid_m) * in_sz + M * N * out_sz,
    )

    vmem_limit = int(min(
        _VMEM_LIMIT_CAP,
        max(32 * _MIB,
            _vmem_bytes(tm, tn, tk, in_sz, out_sz, k_tiled) + 8 * _MIB),
    ))

    if k_tiled:
        kernel = _linear_kernel_ktiled
        grid = (grid_m, grid_n, grid_k)
        in_specs = [
            pl.BlockSpec((tm, tk), lambda i, j, k: (i, k)),   # activations (M, K)
            pl.BlockSpec((tk, tn), lambda i, j, k: (k, j)),   # weight (K, N)
            pl.BlockSpec((1, tn), lambda i, j, k: (0, j)),    # bias
        ]
        out_specs = pl.BlockSpec((tm, tn), lambda i, j, k: (i, j))
        scratch_shapes = [pltpu.VMEM((tm, tn), jnp.float32)]
        semantics = ("parallel", "parallel", "arbitrary")
    else:
        kernel = _linear_kernel_fullk
        grid = (grid_m, grid_n)
        in_specs = [
            pl.BlockSpec((tm, K), lambda i, j: (i, 0)),
            pl.BlockSpec((K, tn), lambda i, j: (0, j)),
            pl.BlockSpec((1, tn), lambda i, j: (0, j)),
        ]
        out_specs = pl.BlockSpec((tm, tn), lambda i, j: (i, j))
        scratch_shapes = []
        semantics = ("parallel", "parallel")

    out = pl.pallas_call(
        kernel,
        out_shape=jax.ShapeDtypeStruct((M, N), out_dtype),
        grid_spec=pltpu.PrefetchScalarGridSpec(
            num_scalar_prefetch=0,
            grid=grid,
            in_specs=in_specs,
            out_specs=out_specs,
            scratch_shapes=scratch_shapes,
        ),
        compiler_params=pltpu.CompilerParams(
            dimension_semantics=semantics,
            vmem_limit_bytes=vmem_limit,
        ),
        cost_estimate=cost,
    )(x2, weight_kn, bias2)

    return out.reshape(*lead, N)


# ----------------------------------------------------------------------------
# Parameter initialization (matches FinalLinear.__init__)
# ----------------------------------------------------------------------------
def weight_from_torch_layout(weight_vd):
    """One-time conversion of a PyTorch (vocab, d_model) weight to (K, N)."""
    return weight_vd.T


def init_final_linear_params(key, d_model, vocab_size, dtype=jnp.float32):
    """Params matching FinalLinear.__init__, stored directly in (K, N) layout:
    - weight_kn: xavier_uniform_ (layout-symmetric bound), shape (d_model, vocab)
    - bias:      PyTorch Linear default uniform(-1/sqrt(fan_in), 1/sqrt(fan_in))
    """
    k_w, k_b = jax.random.split(key)
    xavier_bound = math.sqrt(6.0 / (d_model + vocab_size))
    weight_kn = jax.random.uniform(
        k_w, (d_model, vocab_size), dtype, -xavier_bound, xavier_bound
    )
    b_bound = 1.0 / math.sqrt(d_model)
    bias = jax.random.uniform(k_b, (vocab_size,), dtype, -b_bound, b_bound)
    return weight_kn, bias


if __name__ == "__main__":
    key = jax.random.PRNGKey(0)
    k_x, k_p, k_x2, k_p2, k_x3, k_p3 = jax.random.split(key, 6)

    # Case 1: aligned small shapes. f32-compute path (tight check) and the
    # default bf16-compute path (loose check). Exercises the full-K kernel.
    B, S, D, V = 2, 8, 128, 256
    x = jax.random.normal(k_x, (B, S, D), jnp.float32)
    w_kn, b = init_final_linear_params(k_p, D, V)
    ref = x @ w_kn + b

    out_f32 = final_linear(x, w_kn, b, compute_dtype=jnp.float32)
    jax.block_until_ready(out_f32)
    assert out_f32.shape == (B, S, V)
    assert jnp.allclose(out_f32, ref, atol=1e-4, rtol=1e-4)

    out_bf16 = final_linear(x, w_kn, b)  # default compute_dtype=bfloat16
    jax.block_until_ready(out_bf16)
    assert out_bf16.dtype == jnp.float32
    assert jnp.allclose(out_bf16, ref, atol=1e-1, rtol=1e-1)

    # Case 2: non-divisible shapes exercise the ragged-boundary (no-pad) path.
    B2, S2, D2, V2 = 2, 5, 96, 250
    x2 = jax.random.normal(k_x2, (B2, S2, D2), jnp.float32)
    w2, b2 = init_final_linear_params(k_p2, D2, V2)
    out2 = final_linear(x2, w2, b2, compute_dtype=jnp.float32)
    jax.block_until_ready(out2)
    ref2 = x2 @ w2 + b2
    assert out2.shape == (B2, S2, V2)
    assert jnp.allclose(out2, ref2, atol=1e-4, rtol=1e-4)

    # Case 3: force the K-tiled accumulator kernel (tk < d_model).
    B3, S3, D3, V3 = 2, 8, 256, 384
    x3 = jax.random.normal(k_x3, (B3, S3, D3), jnp.float32)
    w3, b3 = init_final_linear_params(k_p3, D3, V3)
    out3 = final_linear(x3, w3, b3, compute_dtype=jnp.float32, tk=128)
    jax.block_until_ready(out3)
    ref3 = x3 @ w3 + b3
    assert out3.shape == (B3, S3, V3)
    assert jnp.allclose(out3, ref3, atol=1e-4, rtol=1e-4)

    print("KERNEL_OK")
</pallas_src>

<mosaic_0001>
module attributes {stable_mosaic.version = 11 : i64} {
  func.func @_linear_kernel_fullk(%arg0: i32, %arg1: i32, %arg2: memref<16x128xf32, #tpu.memory_space<vmem>>, %arg3: memref<128x256xf32, #tpu.memory_space<vmem>>, %arg4: memref<1x256xf32, #tpu.memory_space<vmem>>, %arg5: memref<16x256xf32, #tpu.memory_space<vmem>>) attributes {dimension_semantics = [#tpu.dimension_semantics<parallel>, #tpu.dimension_semantics<parallel>], iteration_bounds = array<i64: 1, 1>, scalar_prefetch = 0 : i64, scratch_operands = 0 : i64, tpu.core_type = #tpu.core_type<tc>, window_params = [{transform_indices = @transform_0, window_bounds = array<i64: 16, 128>}, {transform_indices = @transform_1, window_bounds = array<i64: 128, 256>}, {transform_indices = @transform_2, window_bounds = array<i64: 1, 256>}, {transform_indices = @transform_3, window_bounds = array<i64: 16, 256>}]} {
    %c0 = arith.constant 0 : index
    %c0_0 = arith.constant 0 : index
    %0 = vector.load %arg2[%c0, %c0_0] : memref<16x128xf32, #tpu.memory_space<vmem>>, vector<16x128xf32>
    %c0_1 = arith.constant 0 : index
    %c0_2 = arith.constant 0 : index
    %1 = vector.load %arg3[%c0_1, %c0_2] : memref<128x256xf32, #tpu.memory_space<vmem>>, vector<128x256xf32>
    %cst = arith.constant dense<0.000000e+00> : vector<16x256xf32>
    %2 = tpu.matmul %0, %1, %cst {dimension_numbers = #tpu.dot_dimension_numbers<[1], [0], [0], [1], [0, 0, 1, 1], [], []>} : vector<16x128xf32>, vector<128x256xf32>, vector<16x256xf32> -> vector<16x256xf32>
    %c0_3 = arith.constant 0 : index
    %c0_4 = arith.constant 0 : index
    %3 = vector.load %arg4[%c0_3, %c0_4] : memref<1x256xf32, #tpu.memory_space<vmem>>, vector<1x256xf32>
    %4 = vector.broadcast %3 : vector<1x256xf32> to vector<16x256xf32>
    %5 = arith.addf %2, %4 : vector<16x256xf32>
    %c0_5 = arith.constant 0 : index
    %c0_6 = arith.constant 0 : index
    %6 = vector.load %arg5[%c0_5, %c0_6] : memref<16x256xf32, #tpu.memory_space<vmem>>, vector<16x256xf32>
    tpu.vector_store %arg5[%c0_5, %c0_6], %5 {strides = array<i32>} : memref<16x256xf32, #tpu.memory_space<vmem>>, vector<16x256xf32>,
    return
  }
  func.func @transform_0(%arg0: i32, %arg1: i32) -> (i32, i32) {
    %c0_i32 = arith.constant 0 : i32
    %c0_i32_0 = arith.constant 0 : i32
    return %arg0, %c0_i32 : i32, i32
  }
  func.func @transform_1(%arg0: i32, %arg1: i32) -> (i32, i32) {
    %c0_i32 = arith.constant 0 : i32
    %c0_i32_0 = arith.constant 0 : i32
    return %c0_i32, %arg1 : i32, i32
  }
  func.func @transform_2(%arg0: i32, %arg1: i32) -> (i32, i32) {
    %c0_i32 = arith.constant 0 : i32
    %c0_i32_0 = arith.constant 0 : i32
    return %c0_i32, %arg1 : i32, i32
  }
  func.func @transform_3(%arg0: i32, %arg1: i32) -> (i32, i32) {
    %c0_i32 = arith.constant 0 : i32
    return %arg0, %arg1 : i32, i32
  }
}

</mosaic_0001>

<llo_original>
// kernel: tpu_custom_call.1
$region0: #{tpu_custom_call.1}
  #allocation0 [shape = 'u32[]', space=smem, size = 0x4, offset = 0x4, fixed_abs, tag = 'smem constant byte address 0x4 - core index']
  #allocation1 [shape = 'u32[144,128]{1,0:T(1,128)}', space=vmem, size = 0x12000, scoped, tag = 'internal scratch']
  %s0 = inlined_call_operand.hbm [shape: f32[16,128], index: 0, kind: input, shape index: {}]
  %s1 = inlined_call_operand.hbm [shape: f32[128,256], index: 1, kind: input, shape index: {}]
  %s2 = inlined_call_operand.vmem [shape: f32[1,256], index: 2, kind: input, shape index: {}]
  %s3 = inlined_call_operand.hbm [shape: f32[16,256], index: 3, kind: output, shape index: {}]
  %s4 = sld [smem:[#allocation0]]
  $region30: #{tpu_custom_call.1} parent=0
    _
  %s6 = ssub.s32 1, %s4
  %s7 = scalar_select 0, %s6, %s4
  $region1: #{tpu_custom_call.1} parent=0
    #allocation2 [shape = 'u8[8192]{0}', space=vmem, size = 0x2000, scoped, tag = 'input window, operand 0, single buffered']
    #allocation3 [shape = 's32[1]{0}', space=sflag, size = 0x4, scoped, tag = 'scoped memory for tpu_custom_call.1']
    #allocation4 [shape = 's32[1]{0}', space=sflag, size = 0x4, scoped, tag = 'scoped memory for tpu_custom_call.1']
    #allocation5 [shape = 'u8[131072]{0}', space=vmem, size = 0x20000, scoped, tag = 'input window, operand 1, single buffered']
    #allocation6 [shape = 's32[1]{0}', space=sflag, size = 0x4, scoped, tag = 'scoped memory for tpu_custom_call.1']
    #allocation7 [shape = 'u8[16384]{0}', space=vmem, size = 0x4000, scoped, tag = 'output window, operand 0, single buffered']
    %8 = vsyncpa [#allocation3], 0
    %9 = vsyncpa [#allocation6], 0
    %10 = vsyncpa [#allocation4], 0
    // Predicated region
    $region2: #{tpu_custom_call.1} parent=1 // pred_check
      _
    $region3: #{tpu_custom_call.1} parent=1 // pred_check_branch
      %12 = sbr.rel (0) target = $region5
    $region4: #{tpu_custom_call.1} parent=1 // pred_region
      %s14 = ssub.s32 256, 256
      %15 = vsyncadd [#allocation3], %s14
      %s16 = sshll.u32 [#allocation2], 4
      %s17 = int_to_ptr.vmem [resolvable:$true] %s16
      %22 = dma.hbm_to_vmem [thread:$0]  %s0, 256, %s17, [#allocation3], 128, 128, 8
    $region5: #{tpu_custom_call.1} parent=1 // pred_fallthru
      _
    // Predicated region
    $region6: #{tpu_custom_call.1} parent=1 // pred_check
      _
    $region7: #{tpu_custom_call.1} parent=1 // pred_check_branch
      %24 = sbr.rel (0) target = $region9
    $region8: #{tpu_custom_call.1} parent=1 // pred_region
      %s26 = ssub.s32 4096, 4096
      %27 = vsyncadd [#allocation6], %s26
      %s28 = sshll.u32 [#allocation5], 4
      %s29 = int_to_ptr.vmem [resolvable:$true] %s28
      %34 = dma.hbm_to_vmem [thread:$0]  %s1, 4096, %s29, [#allocation6], 256, 256, 16
    $region9: #{tpu_custom_call.1} parent=1 // pred_fallthru
      _
    // Predicated region
    $region10: #{tpu_custom_call.1} parent=1 // pred_check
      _
    $region11: #{tpu_custom_call.1} parent=1 // pred_check_branch
      %36 = sbr.rel (0) target = $region13
    $region12: #{tpu_custom_call.1} parent=1 // pred_region
      _
    $region13: #{tpu_custom_call.1} parent=1 // pred_fallthru
      _
    // Predicated region
    $region14: #{tpu_custom_call.1} parent=1 // pred_check
      _
    $region15: #{tpu_custom_call.1} parent=1 // pred_check_branch
      %38 = sbr.rel (0) target = $region17
    $region16: #{tpu_custom_call.1} parent=1 // pred_region
      %39 = dma.done [#allocation3], 256
    $region17: #{tpu_custom_call.1} parent=1 // pred_fallthru
      _
    // Predicated region
    $region18: #{tpu_custom_call.1} parent=1 // pred_check
      _
    $region19: #{tpu_custom_call.1} parent=1 // pred_check_branch
      %41 = sbr.rel (0) target = $region21
    $region20: #{tpu_custom_call.1} parent=1 // pred_region
      %42 = dma.done [#allocation6], 4096
    $region21: #{tpu_custom_call.1} parent=1 // pred_fallthru
      _
    %v43 = vld [vmem:[#allocation2] sm:$0xff]
    %v44 = vld [vmem:[#allocation2 + $0x8] sm:$0xff]
    %v45 = vld [vmem:[#allocation5] sm:$0xff]
    %v46 = vld [vmem:[#allocation5 + $0x8] sm:$0xff]
    %v47 = vld [vmem:[#allocation5 + $0x10] sm:$0xff]
    %v48 = vld [vmem:[#allocation5 + $0x18] sm:$0xff]
    %v49 = vld [vmem:[#allocation5 + $0x20] sm:$0xff]
    %v50 = vld [vmem:[#allocation5 + $0x28] sm:$0xff]
    %v51 = vld [vmem:[#allocation5 + $0x30] sm:$0xff]
    %v52 = vld [vmem:[#allocation5 + $0x38] sm:$0xff]
    %v53 = vld [vmem:[#allocation5 + $0x40] sm:$0xff]
    %v54 = vld [vmem:[#allocation5 + $0x48] sm:$0xff]
    %v55 = vld [vmem:[#allocation5 + $0x50] sm:$0xff]
    %v56 = vld [vmem:[#allocation5 + $0x58] sm:$0xff]
    %v57 = vld [vmem:[#allocation5 + $0x60] sm:$0xff]
    %v58 = vld [vmem:[#allocation5 + $0x68] sm:$0xff]
    %v59 = vld [vmem:[#allocation5 + $0x70] sm:$0xff]
    %v60 = vld [vmem:[#allocation5 + $0x78] sm:$0xff]
    %v61 = vld [vmem:[#allocation5 + $0x80] sm:$0xff]
    %v62 = vld [vmem:[#allocation5 + $0x88] sm:$0xff]
    %v63 = vld [vmem:[#allocation5 + $0x90] sm:$0xff]
    %v64 = vld [vmem:[#allocation5 + $0x98] sm:$0xff]
    %v65 = vld [vmem:[#allocation5 + $0xa0] sm:$0xff]
    %v66 = vld [vmem:[#allocation5 + $0xa8] sm:$0xff]
    %v67 = vld [vmem:[#allocation5 + $0xb0] sm:$0xff]
    %v68 = vld [vmem:[#allocation5 + $0xb8] sm:$0xff]
    %v69 = vld [vmem:[#allocation5 + $0xc0] sm:$0xff]
    %v70 = vld [vmem:[#allocation5 + $0xc8] sm:$0xff]
    %v71 = vld [vmem:[#allocation5 + $0xd0] sm:$0xff]
    %v72 = vld [vmem:[#allocation5 + $0xd8] sm:$0xff]
    %v73 = vld [vmem:[#allocation5 + $0xe0] sm:$0xff]
    %v74 = vld [vmem:[#allocation5 + $0xe8] sm:$0xff]
    %v75 = vld [vmem:[#allocation5 + $0xf0] sm:$0xff]
    %v76 = vld [vmem:[#allocation5 + $0xf8] sm:$0xff]
    %v77 = vld [vmem:[%s2] sm:$0x3]
    %v79 = vlaneseq
    %v80 = vshrl.u32 %v79, 7
    %v81 = vsub.s32 0, %v80
    %v82 = vrot.slane %v77, %v81
    %v83 = vlaneseq
    %v84 = vshrl.u32 %v83, 7
    %v85 = vsub.s32 1, %v84
    %v86 = vrot.slane %v77, %v85
    %89 = vmatprep.subr.mxu0 %v46
    %90 = vmatpush1.msra.mxu0 %v45
    %91 = vmatprep.subr.mxu0 %v48
    %92 = vmatpush1.msra.mxu0 %v47
    %93 = vmatprep.subr.mxu0 %v50
    %94 = vmatpush1.msra.mxu0 %v49
    %95 = vmatprep.subr.mxu0 %v52
    %96 = vmatpush1.msra.mxu0 %v51
    %97 = vmatprep.subr.mxu0 %v54
    %98 = vmatpush1.msra.mxu0 %v53
    %99 = vmatprep.subr.mxu0 %v56
    %100 = vmatpush1.msra.mxu0 %v55
    %101 = vmatprep.subr.mxu0 %v58
    %102 = vmatpush1.msra.mxu0 %v57
    %103 = vmatprep.subr.mxu0 %v60
    %104 = vmatpush1.msra.mxu0 %v59
    %105 = vmatprep.subr.mxu0 %v62
    %106 = vmatpush1.msra.mxu0 %v61
    %107 = vmatprep.subr.mxu0 %v64
    %108 = vmatpush1.msra.mxu0 %v63
    %109 = vmatprep.subr.mxu0 %v66
    %110 = vmatpush1.msra.mxu0 %v65
    %111 = vmatprep.subr.mxu0 %v68
    %112 = vmatpush1.msra.mxu0 %v67
    %113 = vmatprep.subr.mxu0 %v70
    %114 = vmatpush1.msra.mxu0 %v69
    %115 = vmatprep.subr.mxu0 %v72
    %116 = vmatpush1.msra.mxu0 %v71
    %117 = vmatprep.subr.mxu0 %v74
    %118 = vmatpush1.msra.mxu0 %v73
    %119 = vmatprep.subr.mxu0 %v76
    %120 = vmatpush1.msra.mxu0 %v75
    %121 = vmatprep.subr.mxu0 0.0
    %122 = vmatpush1.msra.mxu0 0.0
    %123 = vmatprep.subr.mxu0 0.0
    %124 = vmatpush1.msra.mxu0 0.0
    %125 = vmatprep.subr.mxu0 0.0
    %126 = vmatpush1.msra.mxu0 0.0
    %127 = vmatprep.subr.mxu0 0.0
    %128 = vmatpush1.msra.mxu0 0.0
    %129 = vmatprep.subr.mxu0 0.0
    %130 = vmatpush1.msra.mxu0 0.0
    %131 = vmatprep.subr.mxu0 0.0
    %132 = vmatpush1.msra.mxu0 0.0
    %133 = vmatprep.subr.mxu0 0.0
    %134 = vmatpush1.msra.mxu0 0.0
    %135 = vmatprep.subr.mxu0 0.0
    %136 = vmatpush1.msra.mxu0 0.0
    %137 = vmatprep.subr.mxu0 0.0
    %138 = vmatpush1.msra.mxu0 0.0
    %139 = vmatprep.subr.mxu0 0.0
    %140 = vmatpush1.msra.mxu0 0.0
    %141 = vmatprep.subr.mxu0 0.0
    %142 = vmatpush1.msra.mxu0 0.0
    %143 = vmatprep.subr.mxu0 0.0
    %144 = vmatpush1.msra.mxu0 0.0
    %145 = vmatprep.subr.mxu0 0.0
    %146 = vmatpush1.msra.mxu0 0.0
    %147 = vmatprep.subr.mxu0 0.0
    %148 = vmatpush1.msra.mxu0 0.0
    %149 = vmatprep.subr.mxu0 0.0
    %150 = vmatpush1.msra.mxu0 0.0
    %151 = vmatprep.subr.mxu0 0.0
    %152 = vmatpush1.msra.mxu0 0.0
    %153 = vmatprep.mubr.f32.mxu0 0.0
    %154 = vmatmul.mubr.f32.gmra.mrb[0].mxu0 %v43
    %v155 = vpop.f32.mrb[0].mxu0
    %v156 = vadd.f32 %v82, %v155
    %v157 = vpop.f32.mrb[0].mxu0
    %v158 = vadd.f32 %v86, %v157
    %159 = vmatprep.mubr.f32.mxu0 0.0
    %160 = vmatmul.mubr.f32.gmra.mrb[0].mxu0 %v44
    %v161 = vpop.f32.mrb[0].mxu0
    %v162 = vadd.f32 %v82, %v161
    %v163 = vpop.f32.mrb[0].mxu0
    %v164 = vadd.f32 %v86, %v163
    %165 = vdwg.mxu0
    %166 = vst [vmem:[#allocation7] sm:$0xff] %v156
    %167 = vst [vmem:[#allocation7 + $0x8] sm:$0xff] %v158
    %168 = vst [vmem:[#allocation7 + $0x10] sm:$0xff] %v162
    %169 = vst [vmem:[#allocation7 + $0x18] sm:$0xff] %v164
    // Predicated region
    $region22: #{tpu_custom_call.1} parent=1 // pred_check
      _
    $region23: #{tpu_custom_call.1} parent=1 // pred_check_branch
      %171 = sbr.rel (0) target = $region25
    $region24: #{tpu_custom_call.1} parent=1 // pred_region
      %s173 = ssub.s32 512, 512
      %174 = vsyncadd [#allocation4], %s173
      %s175 = sshll.u32 [#allocation7], 4
      %s176 = int_to_ptr.vmem [resolvable:$true] %s175
      %181 = dma.vmem_to_hbm [thread:$0]  %s176, 512, %s3, [#allocation4], 256, 256, 16
    $region25: #{tpu_custom_call.1} parent=1 // pred_fallthru
      _
    // Predicated region
    $region26: #{tpu_custom_call.1} parent=1 // pred_check
      _
    $region27: #{tpu_custom_call.1} parent=1 // pred_check_branch
      %183 = sbr.rel (0) target = $region29
    $region28: #{tpu_custom_call.1} parent=1 // pred_region
      %184 = dma.done [#allocation4], 512
    $region29: #{tpu_custom_call.1} parent=1 // pred_fallthru
      _
    %185 = vsyncpa [#allocation3], 1
    %186 = vsyncpa [#allocation6], 1
    %187 = vsyncpa [#allocation4], 1

</llo_original>
